<compile_context>
chip_gen: v6e
topology: v6e:2x2x1
jax: 0.10.0
libtpu: 0.0.40
codegen_flags: <defaults>
</compile_context>

<pallas_src>
import jax
import jax.numpy as jnp
from jax import lax
from jax.experimental import pallas as pl
from jax.experimental.pallas import tpu as pltpu

_EPS = 1e-5  # nn.BatchNorm2d default


def _bn_kernel(idx_ref, x_ref, gamma_ref, beta_ref, out_ref):
    # idx_ref: scalar-prefetched BN index; already consumed by the param index_maps.
    del idx_ref
    c = pl.program_id(0)
    tc = out_ref.shape[1]                                     # static block channel count

    x = x_ref[...].astype(jnp.float32)                        # (B, TC, N)
    count = x.shape[0] * x.shape[2]                           # B * H * W (static)
    inv_n = 1.0 / count

    # One-pass biased batch statistics: lane (XLU) reduce first, then batch reduce.
    s = jnp.sum(jnp.sum(x, axis=2, keepdims=True), axis=0, keepdims=True)      # (1, TC, 1)
    sq = jnp.sum(jnp.sum(x * x, axis=2, keepdims=True), axis=0, keepdims=True)  # (1, TC, 1)
    mean = s * inv_n
    var = jnp.maximum(sq * inv_n - mean * mean, 0.0)          # clamp tiny negatives

    # gamma/beta are resident as a full-C block; slice this step's TC channels.
    if tc == gamma_ref.shape[1]:
        gamma = gamma_ref[...].astype(jnp.float32)            # (1, TC, 1)
        beta = beta_ref[...].astype(jnp.float32)
    else:
        start = pl.multiple_of(c * tc, tc)                    # tc is a multiple of 8 here
        gamma = gamma_ref[:, pl.ds(start, tc), :].astype(jnp.float32)
        beta = beta_ref[:, pl.ds(start, tc), :].astype(jnp.float32)

    inv = lax.rsqrt(var + _EPS)                               # EUP rsqrt (free slot)
    scale = gamma * inv                                       # (1, TC, 1)
    shift = beta - mean * scale                               # (1, TC, 1)
    out_ref[...] = (x * scale + shift).astype(out_ref.dtype)  # mul + add epilogue


def _vmem_limit_bytes():
    """Generation-aware scoped-VMEM limit: ~75% of physical capacity, capped."""
    try:
        cap = int(getattr(pltpu.get_tpu_info(), "vmem_capacity_bytes",
                          128 * 1024 * 1024))
    except Exception:
        cap = 128 * 1024 * 1024
    # v5e/v6e (128 MiB) -> 96 MiB; v7x (64 MiB) -> 48 MiB. Cap for safety headroom.
    return int(min(int(cap * 0.75), 112 * 1024 * 1024))


def _pick_channel_tile(B, C, N, itemsize, vmem_limit):
    """Largest multiple-of-8 divisor of C whose pipeline footprint fits the VMEM limit."""
    working_itemsize = max(itemsize, 4)        # kernel computes / stores f32 temps
    # Residency per grid step ~= 2x input buf + 2x output buf + ~2 in-kernel f32 temps.
    budget = vmem_limit // 6
    if C % 8 != 0:
        # Small / odd channel counts: one full-channel block (single grid step).
        return C
    divisors = [d for d in range(8, C + 1, 8) if C % d == 0]
    fitting = [d for d in divisors if B * d * N * working_itemsize <= budget]
    tc = max(fitting) if fitting else min(divisors)
    # Guarantee >=2 grid steps when possible so v7x's two TensorCores both get work.
    if C // tc == 1 and C >= 16 and (C // 2) % 8 == 0:
        tc = C // 2
    return tc


def _batch_norm_multiple_pallas(x, gammas, betas, bn_index):
    B, C, H, W = x.shape
    N = H * W
    num_bn = gammas.shape[0]

    x_r = x.reshape(B, C, N)                    # free reshape, single HBM read
    g_r = gammas.reshape(num_bn, C, 1)          # (num_bn, C, 1): block (1, C, 1) is legal
    b_r = betas.reshape(num_bn, C, 1)
    idx = jnp.asarray(bn_index, dtype=jnp.int32).reshape(1)

    vmem_limit = _vmem_limit_bytes()
    TC = _pick_channel_tile(B, C, N, x.dtype.itemsize, vmem_limit)
    grid = (C // TC,)

    cost = pl.CostEstimate(
        flops=int(7 * B * C * N),               # x*x, 2 reductions, mul+add epilogue
        transcendentals=int(C),                 # one rsqrt per channel
        bytes_accessed=int(2 * x.nbytes + g_r.nbytes + b_r.nbytes),
    )

    out = pl.pallas_call(
        _bn_kernel,
        out_shape=jax.ShapeDtypeStruct((B, C, N), x.dtype),
        grid_spec=pltpu.PrefetchScalarGridSpec(
            num_scalar_prefetch=1,
            grid=grid,
            in_specs=[
                pl.BlockSpec((B, TC, N), lambda c, idx_ref: (0, c, 0)),           # x tile
                pl.BlockSpec((1, C, 1), lambda c, idx_ref: (idx_ref[0], 0, 0)),   # gamma row (resident)
                pl.BlockSpec((1, C, 1), lambda c, idx_ref: (idx_ref[0], 0, 0)),   # beta row (resident)
            ],
            out_specs=pl.BlockSpec((B, TC, N), lambda c, idx_ref: (0, c, 0)),
        ),
        compiler_params=pltpu.CompilerParams(
            dimension_semantics=("parallel",),
            vmem_limit_bytes=vmem_limit),
        cost_estimate=cost,
    )(idx, x_r, g_r, b_r)

    return out.reshape(B, C, H, W)


def batch_norm_multiple_forward(x_and_name, gammas, betas, bn_names=None):
    """Mirrors batch_norm_multiple.forward: x_and_name = (tensor, name_bn)."""
    out, name_bn = x_and_name
    if name_bn is None:
        bn_index = 0  # `bn_names is None` path: single BN instance
    else:
        bn_index = {n: i for i, n in enumerate(bn_names)}[name_bn]
    return _batch_norm_multiple_pallas(out, gammas, betas, bn_index)


def batch_norm_multiple_ref(x, gamma, beta, eps=_EPS):
    """Pure-JAX reference for training-mode BatchNorm2d with affine params."""
    mean = x.mean(axis=(0, 2, 3), keepdims=True)
    var = ((x - mean) ** 2).mean(axis=(0, 2, 3), keepdims=True)  # biased
    g = gamma.reshape(1, -1, 1, 1)
    b = beta.reshape(1, -1, 1, 1)
    return (x - mean) / jnp.sqrt(var + eps) * g + b


if __name__ == "__main__":
    B, C, H, W = 2, 4, 16, 16
    bn_names = ["gen", "dis", "aux"]
    num_bn = len(bn_names)

    key = jax.random.PRNGKey(0)
    kx, kg, kb = jax.random.split(key, 3)
    x = jax.random.normal(kx, (B, C, H, W), dtype=jnp.float32)
    # One (gamma, beta) pair per named BN (BatchNorm2d affine parameters).
    gammas = 1.0 + 0.1 * jax.random.normal(kg, (num_bn, C), dtype=jnp.float32)
    betas = 0.1 * jax.random.normal(kb, (num_bn, C), dtype=jnp.float32)

    # Named-BN path: selects the "dis" BN via the scalar-prefetched row index.
    name_bn = "dis"
    out = batch_norm_multiple_forward((x, name_bn), gammas, betas, bn_names)
    out = jax.block_until_ready(out)

    idx = bn_names.index(name_bn)
    ref = batch_norm_multiple_ref(x, gammas[idx], betas[idx])
    assert out.shape == x.shape
    assert jnp.allclose(out, ref, atol=1e-4, rtol=1e-4), \
        f"max err {jnp.max(jnp.abs(out - ref))}"

    # name_bn=None path (single BN instance, `bn_names is None` in the module).
    out0 = batch_norm_multiple_forward((x, None), gammas[:1], betas[:1], None)
    out0 = jax.block_until_ready(out0)
    ref0 = batch_norm_multiple_ref(x, gammas[0], betas[0])
    assert jnp.allclose(out0, ref0, atol=1e-4, rtol=1e-4), \
        f"max err {jnp.max(jnp.abs(out0 - ref0))}"

    print("KERNEL_OK")
</pallas_src>

<mosaic_0001>
module attributes {stable_mosaic.version = 11 : i64} {
  func.func @_bn_kernel(%arg0: i32, %arg1: memref<1xi32, #tpu.memory_space<smem>>, %arg2: memref<2x4x256xf32, #tpu.memory_space<vmem>>, %arg3: memref<1x4x1xf32, #tpu.memory_space<vmem>>, %arg4: memref<1x4x1xf32, #tpu.memory_space<vmem>>, %arg5: memref<2x4x256xf32, #tpu.memory_space<vmem>>) attributes {dimension_semantics = [#tpu.dimension_semantics<parallel>], iteration_bounds = array<i64: 1>, scalar_prefetch = 1 : i64, scratch_operands = 0 : i64, tpu.core_type = #tpu.core_type<tc>, window_params = [{transform_indices = @transform_0, window_bounds = array<i64: 2, 4, 256>}, {transform_indices = @transform_1, window_bounds = array<i64: 1, 4, 1>}, {transform_indices = @transform_2, window_bounds = array<i64: 1, 4, 1>}, {transform_indices = @transform_3, window_bounds = array<i64: 2, 4, 256>}]} {
    %c0 = arith.constant 0 : index
    %c0_0 = arith.constant 0 : index
    %c0_1 = arith.constant 0 : index
    %0 = vector.load %arg2[%c0, %c0_0, %c0_1] : memref<2x4x256xf32, #tpu.memory_space<vmem>>, vector<2x4x256xf32>
    %cst = arith.constant dense<0.000000e+00> : vector<2x4xf32>
    %1 = vector.multi_reduction <add>, %0, %cst [2] : vector<2x4x256xf32> to vector<2x4xf32>
    %2 = vector.shape_cast %1 : vector<2x4xf32> to vector<2x4x1xf32>
    %cst_2 = arith.constant dense<0.000000e+00> : vector<4x1xf32>
    %3 = vector.multi_reduction <add>, %2, %cst_2 [0] : vector<2x4x1xf32> to vector<4x1xf32>
    %4 = vector.shape_cast %3 : vector<4x1xf32> to vector<1x4x1xf32>
    %5 = arith.mulf %0, %0 : vector<2x4x256xf32>
    %cst_3 = arith.constant dense<0.000000e+00> : vector<2x4xf32>
    %6 = vector.multi_reduction <add>, %5, %cst_3 [2] : vector<2x4x256xf32> to vector<2x4xf32>
    %7 = vector.shape_cast %6 : vector<2x4xf32> to vector<2x4x1xf32>
    %cst_4 = arith.constant dense<0.000000e+00> : vector<4x1xf32>
    %8 = vector.multi_reduction <add>, %7, %cst_4 [0] : vector<2x4x1xf32> to vector<4x1xf32>
    %9 = vector.shape_cast %8 : vector<4x1xf32> to vector<1x4x1xf32>
    %cst_5 = arith.constant 0.001953125 : f32
    %10 = vector.broadcast %cst_5 : f32 to vector<1x4x1xf32>
    %11 = arith.mulf %4, %10 : vector<1x4x1xf32>
    %cst_6 = arith.constant 0.001953125 : f32
    %12 = vector.broadcast %cst_6 : f32 to vector<1x4x1xf32>
    %13 = arith.mulf %9, %12 : vector<1x4x1xf32>
    %14 = arith.mulf %11, %11 : vector<1x4x1xf32>
    %15 = arith.subf %13, %14 : vector<1x4x1xf32>
    %cst_7 = arith.constant 0.000000e+00 : f32
    %16 = vector.broadcast %cst_7 : f32 to vector<1x4x1xf32>
    %17 = arith.maximumf %15, %16 : vector<1x4x1xf32>
    %c0_8 = arith.constant 0 : index
    %c0_9 = arith.constant 0 : index
    %c0_10 = arith.constant 0 : index
    %18 = vector.load %arg3[%c0_8, %c0_9, %c0_10] : memref<1x4x1xf32, #tpu.memory_space<vmem>>, vector<1x4x1xf32>
    %c0_11 = arith.constant 0 : index
    %c0_12 = arith.constant 0 : index
    %c0_13 = arith.constant 0 : index
    %19 = vector.load %arg4[%c0_11, %c0_12, %c0_13] : memref<1x4x1xf32, #tpu.memory_space<vmem>>, vector<1x4x1xf32>
    %cst_14 = arith.constant 9.99999974E-6 : f32
    %20 = vector.broadcast %cst_14 : f32 to vector<1x4x1xf32>
    %21 = arith.addf %17, %20 : vector<1x4x1xf32>
    %22 = math.rsqrt %21 : vector<1x4x1xf32>
    %23 = arith.mulf %18, %22 : vector<1x4x1xf32>
    %24 = arith.mulf %11, %23 : vector<1x4x1xf32>
    %25 = arith.subf %19, %24 : vector<1x4x1xf32>
    %26 = vector.broadcast %23 : vector<1x4x1xf32> to vector<2x4x256xf32>
    %27 = arith.mulf %0, %26 : vector<2x4x256xf32>
    %28 = vector.broadcast %25 : vector<1x4x1xf32> to vector<2x4x256xf32>
    %29 = arith.addf %27, %28 : vector<2x4x256xf32>
    %c0_15 = arith.constant 0 : index
    %c0_16 = arith.constant 0 : index
    %c0_17 = arith.constant 0 : index
    %30 = vector.load %arg5[%c0_15, %c0_16, %c0_17] : memref<2x4x256xf32, #tpu.memory_space<vmem>>, vector<2x4x256xf32>
    tpu.vector_store %arg5[%c0_15, %c0_16, %c0_17], %29 {strides = array<i32>} : memref<2x4x256xf32, #tpu.memory_space<vmem>>, vector<2x4x256xf32>,
    return
  }
  func.func @transform_0(%arg0: i32, %arg1: memref<1xi32, #tpu.memory_space<smem>>) -> (i32, i32, i32) {
    %c0_i32 = arith.constant 0 : i32
    %c0_i32_0 = arith.constant 0 : i32
    %c0_i32_1 = arith.constant 0 : i32
    return %c0_i32, %arg0, %c0_i32_0 : i32, i32, i32
  }
  func.func @transform_1(%arg0: i32, %arg1: memref<1xi32, #tpu.memory_space<smem>>) -> (i32, i32, i32) {
    %c0 = arith.constant 0 : index
    %0 = memref.load %arg1[%c0] : memref<1xi32, #tpu.memory_space<smem>>
    %c0_i32 = arith.constant 0 : i32
    %c0_i32_0 = arith.constant 0 : i32
    %c0_i32_1 = arith.constant 0 : i32
    return %0, %c0_i32, %c0_i32_0 : i32, i32, i32
  }
  func.func @transform_2(%arg0: i32, %arg1: memref<1xi32, #tpu.memory_space<smem>>) -> (i32, i32, i32) {
    %c0 = arith.constant 0 : index
    %0 = memref.load %arg1[%c0] : memref<1xi32, #tpu.memory_space<smem>>
    %c0_i32 = arith.constant 0 : i32
    %c0_i32_0 = arith.constant 0 : i32
    %c0_i32_1 = arith.constant 0 : i32
    return %0, %c0_i32, %c0_i32_0 : i32, i32, i32
  }
  func.func @transform_3(%arg0: i32, %arg1: memref<1xi32, #tpu.memory_space<smem>>) -> (i32, i32, i32) {
    %c0_i32 = arith.constant 0 : i32
    %c0_i32_0 = arith.constant 0 : i32
    %c0_i32_1 = arith.constant 0 : i32
    return %c0_i32, %arg0, %c0_i32_0 : i32, i32, i32
  }
}

</mosaic_0001>

<llo_original>
// kernel: tpu_custom_call.1
$region0: #{tpu_custom_call.1}
  #allocation0 [shape = 'u32[]', space=smem, size = 0x4, offset = 0x4, fixed_abs, tag = 'smem constant byte address 0x4 - core index']
  #allocation1 [shape = 'u32[144,128]{1,0:T(1,128)}', space=vmem, size = 0x12000, scoped, tag = 'internal scratch']
  #allocation2 [shape = 's32[1]{0}', space=sflag, size = 0x4, scoped, tag = 'scoped memory for tpu_custom_call.1']
  #allocation3 [shape = 's32[1]{0:T(128)S(6)}', space=smem, size = 0x200, scoped, tag = 'prefetched SMEM operand 0']
  %s0 = inlined_call_operand.<no memory space> [shape: s32[1], index: 0, kind: input, shape index: {}]
  %s1 = inlined_call_operand.vmem [shape: f32[2,4,256], index: 1, kind: input, shape index: {}]
  %s2 = inlined_call_operand.vmem [shape: f32[3,4,1], index: 2, kind: input, shape index: {}]
  %s3 = inlined_call_operand.vmem [shape: f32[3,4,1], index: 3, kind: input, shape index: {}]
  %s4 = inlined_call_operand.hbm [shape: f32[2,4,256], index: 4, kind: output, shape index: {}]
  %s5 = sld [smem:[#allocation0]]
  $region22: #{tpu_custom_call.1} parent=0
    _
  %s7 = ssub.s32 1, %s5
  %s8 = scalar_select 0, %s7, %s5
  %9 = sst [smem:[#allocation3]] %s0
  $region1: #{tpu_custom_call.1} parent=0
    #allocation4 [shape = 'u8[8192]{0}', space=vmem, size = 0x2000, scoped, tag = 'output window, operand 0, single buffered']
    #allocation5 [shape = 's32[1]{0}', space=sflag, size = 0x4, scoped, tag = 'scoped memory for tpu_custom_call.1']
    %10 = vsyncpa [#allocation5], 0
    // Predicated region
    $region2: #{tpu_custom_call.1} parent=1 // pred_check
      _
    $region3: #{tpu_custom_call.1} parent=1 // pred_check_branch
      %12 = sbr.rel (0) target = $region5
    $region4: #{tpu_custom_call.1} parent=1 // pred_region
      _
    $region5: #{tpu_custom_call.1} parent=1 // pred_fallthru
      _
    // Predicated region
    $region6: #{tpu_custom_call.1} parent=1 // pred_check
      _
    $region7: #{tpu_custom_call.1} parent=1 // pred_check_branch
      %14 = sbr.rel (0) target = $region9
    $region8: #{tpu_custom_call.1} parent=1 // pred_region
      %s15 = sld [smem:[#allocation3]]
      %p16 = scmp.lt.s32.totalorder %s15, 2
      %s17 = scalar_select %p16, %s15, 2
      %s18 = smul.addr %s17, 4
      %s19 = scalar_lea.vmem %s2, %s18
      %s20 = sld [smem:[#allocation3]]
    $region9: #{tpu_custom_call.1} parent=1 // pred_fallthru
      _
    // Predicated region
    $region10: #{tpu_custom_call.1} parent=1 // pred_check
      _
    $region11: #{tpu_custom_call.1} parent=1 // pred_check_branch
      %22 = sbr.rel (0) target = $region13
    $region12: #{tpu_custom_call.1} parent=1 // pred_region
      %s23 = sld [smem:[#allocation3]]
      %p24 = scmp.lt.s32.totalorder %s23, 2
      %s25 = scalar_select %p24, %s23, 2
      %s26 = smul.addr %s25, 4
      %s27 = scalar_lea.vmem %s3, %s26
      %s28 = sld [smem:[#allocation3]]
    $region13: #{tpu_custom_call.1} parent=1 // pred_fallthru
      _
    %s29 = sld [smem:[#allocation3]]
    %p30 = scmp.lt.s32.totalorder %s29, 2
    %s31 = scalar_select %p30, %s29, 2
    %s32 = smul.addr %s31, 4
    %s33 = scalar_lea.vmem %s2, %s32
    %s34 = sld [smem:[#allocation3]]
    %p35 = scmp.lt.s32.totalorder %s34, 2
    %s36 = scalar_select %p35, %s34, 2
    %s37 = smul.addr %s36, 4
    %s38 = scalar_lea.vmem %s3, %s37
    %s39 = sld [smem:[#allocation3]]
    %p40 = scmp.lt.s32.totalorder %s39, 2
    %s41 = scalar_select %p40, %s39, 2
    %s42 = smul.addr %s41, 4
    %s43 = scalar_lea.vmem %s2, %s42
    %s44 = sld [smem:[#allocation3]]
    %s45 = sld [smem:[#allocation3]]
    %p46 = scmp.lt.s32.totalorder %s45, 2
    %s47 = scalar_select %p46, %s45, 2
    %s48 = smul.addr %s47, 4
    %s49 = scalar_lea.vmem %s3, %s48
    %s50 = sld [smem:[#allocation3]]
    %v51 = vld [vmem:[%s1] sm:$0xff]
    %v52 = vld [vmem:[%s1 + $0x8] sm:$0xff]
    %v55 = vcombine.high %v51, %v51
    %v56 = vcombine.high %v52, %v52
    %vm59 = vcmask 1043456
    %v60 = vsel %vm59, %v51, 0.0
    %v61 = vsel %vm59, %v55, 0.0
    %v62 = vadd.f32 %v60, %v61
    %63 = vadd.xlane.f32.xlu0 %v62
    %v64 = vpop.xlane.xlu0 %63
    %v65 = vsel %vm59, %v52, 0.0
    %v66 = vsel %vm59, %v56, 0.0
    %v67 = vadd.f32 %v65, %v66
    %68 = vadd.xlane.f32.xlu0 %v67
    %v69 = vpop.xlane.xlu0 %68
    %v70 = vsel %vm59, %v64, 0.0
    %v71 = vsel %vm59, %v69, 0.0
    %v72 = vadd.f32 %v70, %v71
    %v73 = vmul.f32 %v51, %v51
    %v74 = vmul.f32 %v52, %v52
    %v77 = vcombine.high %v73, %v73
    %v78 = vcombine.high %v74, %v74
    %v81 = vsel %vm59, %v73, 0.0
    %v82 = vsel %vm59, %v77, 0.0
    %v83 = vadd.f32 %v81, %v82
    %84 = vadd.xlane.f32.xlu0 %v83
    %v85 = vpop.xlane.xlu0 %84
    %v86 = vsel %vm59, %v74, 0.0
    %v87 = vsel %vm59, %v78, 0.0
    %v88 = vadd.f32 %v86, %v87
    %89 = vadd.xlane.f32.xlu0 %v88
    %v90 = vpop.xlane.xlu0 %89
    %v91 = vsel %vm59, %v85, 0.0
    %v92 = vsel %vm59, %v90, 0.0
    %v93 = vadd.f32 %v91, %v92
    %v94 = vmul.f32 %v72, 0.001953125
    %v95 = vmul.f32 %v93, 0.001953125
    %v96 = vmul.f32 %v94, %v94
    %v97 = vsub.f32 %v95, %v96
    %v98 = vmax.f32 %v97, 0.0
    %v99 = vld [vmem:[%s43] sm:$0xf]
    %v100 = vld [vmem:[%s49] sm:$0xf]
    %v101 = vadd.f32 %v98, 1e-05
    %v102 = vrsqrt.pop %v101
    %v103 = vmul.f32 %v99, %v102
    %v104 = vmul.f32 %v94, %v103
    %v105 = vsub.f32 %v100, %v104
    %107 = vset.pattern.permute.xlu0 0
    %108 = vperm.xlu0 %107, %v103
    %v109 = vpop.permute.xlu0 %108
    %v111 = vunpack.c.l.s4 839922192
    %v112 = vunpack.c.0.s8 %v111
    %v113 = vlaneseq
    %v114 = vshrl.u32 %v113, 7
    %v115 = vsub.s32 %v112, %v114
    %v116 = vrot.slane %v109, %v115
    %v118 = vmul.f32 %v51, %v116
    %v119 = vmul.f32 %v52, %v116
    %121 = vset.pattern.permute.xlu0 0
    %122 = vperm.xlu0 %121, %v105
    %v123 = vpop.permute.xlu0 %122
    %v125 = vunpack.c.l.s4 839922192
    %v126 = vunpack.c.0.s8 %v125
    %v127 = vlaneseq
    %v128 = vshrl.u32 %v127, 7
    %v129 = vsub.s32 %v126, %v128
    %v130 = vrot.slane %v123, %v129
    %v132 = vadd.f32 %v118, %v130
    %v133 = vadd.f32 %v119, %v130
    %134 = vst [vmem:[#allocation4] sm:$0xff] %v132
    %135 = vst [vmem:[#allocation4 + $0x8] sm:$0xff] %v133
    // Predicated region
    $region14: #{tpu_custom_call.1} parent=1 // pred_check
      _
    $region15: #{tpu_custom_call.1} parent=1 // pred_check_branch
      %137 = sbr.rel (0) target = $region17
    $region16: #{tpu_custom_call.1} parent=1 // pred_region
      %s139 = ssub.s32 256, 256
      %140 = vsyncadd [#allocation5], %s139
      %s141 = sshll.u32 [#allocation4], 4
      %s142 = int_to_ptr.vmem [resolvable:$true] %s141
      %147 = dma.vmem_to_hbm [thread:$0]  %s142, 256, %s4, [#allocation5], 128, 128, 8
    $region17: #{tpu_custom_call.1} parent=1 // pred_fallthru
      _
    // Predicated region
    $region18: #{tpu_custom_call.1} parent=1 // pred_check
      _
    $region19: #{tpu_custom_call.1} parent=1 // pred_check_branch
      %149 = sbr.rel (0) target = $region21
    $region20: #{tpu_custom_call.1} parent=1 // pred_region
      %150 = dma.done [#allocation5], 256
    $region21: #{tpu_custom_call.1} parent=1 // pred_fallthru
      _
    %151 = vsyncpa [#allocation5], 1

</llo_original>
